<compile_context>
chip_gen: v7x
topology: tpu7x:2x2x1
jax: 0.10.0
libtpu: 0.0.40
codegen_flags: <defaults>
</compile_context>

<pallas_src>
import jax
import jax.numpy as jnp
from jax.experimental import pallas as pl
from jax.experimental.pallas import tpu as pltpu

HALF_LOG_2PI = 0.9189385332046727   # 0.5 * log(2 * pi)


def ppo_policy_kernel(obs_ref, w1_ref, b1_ref, w2_ref, b2_ref, w3_ref, b3_ref,
                      log_std_ref, noise_ref, act_ref):
    # ---- mean MLP: 3 bf16 MXU matmuls, f32 accumulate, f32 tanh ----
    obs = obs_ref[...].astype(jnp.bfloat16)            # in-kernel cast: free VPU filler
    h1 = jnp.tanh(jnp.dot(obs, w1_ref[...].astype(jnp.bfloat16),
                          preferred_element_type=jnp.float32) + b1_ref[...])
    h2 = jnp.tanh(jnp.dot(h1.astype(jnp.bfloat16), w2_ref[...].astype(jnp.bfloat16),
                          preferred_element_type=jnp.float32) + b2_ref[...])
    mean = jnp.dot(h2.astype(jnp.bfloat16), w3_ref[...].astype(jnp.bfloat16),
                   preferred_element_type=jnp.float32) + b3_ref[...]

    # ---- Normal(mean, exp(log_std)) sample with externally supplied N(0,1) noise ----
    act_ref[...] = mean + jnp.exp(log_std_ref[...]) * noise_ref[...]


def ppo_policy_forward(obs, params, noise, *, block_b=2048):
    """PPOPolicy forward (act=None path) -> (act, log_probs, entropy)."""
    # TODO(synk): only the act=None sampling path is implemented; the explicit
    # `act=...` and `deterministic=True` branches of the module are not wired up.
    B, obs_dim = obs.shape
    act_dim = params["w3"].shape[1]
    assert block_b % 8 == 0

    # Batch tile: single full-B block for small batches, else block_b rows per
    # grid step (cdiv grid handles a ragged tail without materializing padded
    # copies of obs/noise in HBM).
    tb = B if B <= block_b else block_b
    grid = (pl.cdiv(B, tb),)

    def const_spec(arr):   # resident parameter block (same block index every step)
        return pl.BlockSpec(arr.shape, lambda i: (0, 0))

    act = pl.pallas_call(
        ppo_policy_kernel,
        out_shape=jax.ShapeDtypeStruct((B, act_dim), jnp.float32),
        grid=grid,
        in_specs=[
            pl.BlockSpec((tb, obs_dim), lambda i: (i, 0)),    # obs tile (pipelined, f32)
            const_spec(params["w1"]), const_spec(params["b1"]),
            const_spec(params["w2"]), const_spec(params["b2"]),
            const_spec(params["w3"]), const_spec(params["b3"]),
            const_spec(params["log_std"]),
            pl.BlockSpec((tb, act_dim), lambda i: (i, 0)),    # noise tile (pipelined)
        ],
        out_specs=pl.BlockSpec((tb, act_dim), lambda i: (i, 0)),
        # Batch axis is fully independent -> "parallel".
        # TODO(synk): on v7x, verify in the trace that both TensorCores receive
        # grid steps; if not, switch this axis to pltpu.CORE_PARALLEL.
        compiler_params=pltpu.CompilerParams(
            dimension_semantics=("parallel",)),
    )(obs, params["w1"], params["b1"], params["w2"], params["b2"],
      params["w3"], params["b3"], params["log_std"], noise)

    # log_prob(act).sum(-1, keepdims=True): act - mean == std * noise exactly, so
    # per-dim logp = -0.5*noise^2 - log_std - 0.5*log(2*pi).  Only noise/log_std
    # are needed -> cheap fused wrapper op, no per-row kernel output stream.
    log_std = params["log_std"]
    log_probs = (-0.5) * jnp.sum(noise * noise, axis=-1, keepdims=True) \
        - (jnp.sum(log_std, axis=-1, keepdims=True) + act_dim * HALF_LOG_2PI)

    # entropy depends only on log_std.
    ent_row = jnp.sum(0.5 + HALF_LOG_2PI + log_std, axis=-1, keepdims=True)
    entropy = jnp.broadcast_to(ent_row, (B, 1))
    return act, log_probs, entropy


def init_params(key, obs_dim, act_dim, hidden=64):
    """Deterministic synthetic init mirroring the module's parameter shapes."""
    k1, k2, k3 = jax.random.split(key, 3)
    w1 = jax.random.normal(k1, (obs_dim, hidden), jnp.float32) * (2.0 ** 0.5 / obs_dim ** 0.5)
    w2 = jax.random.normal(k2, (hidden, hidden), jnp.float32) * (2.0 ** 0.5 / hidden ** 0.5)
    w3 = jax.random.normal(k3, (hidden, act_dim), jnp.float32) * 0.01
    return {
        "w1": w1, "b1": jnp.zeros((1, hidden), jnp.float32),
        "w2": w2, "b2": jnp.zeros((1, hidden), jnp.float32),
        "w3": w3, "b3": jnp.zeros((1, act_dim), jnp.float32),
        "log_std": jnp.zeros((1, act_dim), jnp.float32),   # nn.Parameter(T.zeros(1, act_dim))
    }


def reference_forward(obs, params, noise):
    """Plain-JAX f32 reference matching torch.distributions.Normal math."""
    h1 = jnp.tanh(obs @ params["w1"] + params["b1"])
    h2 = jnp.tanh(h1 @ params["w2"] + params["b2"])
    mean = h2 @ params["w3"] + params["b3"]
    std = jnp.exp(params["log_std"])
    act = mean + std * noise
    logp = jnp.sum(-0.5 * ((act - mean) / std) ** 2 - params["log_std"] - HALF_LOG_2PI,
                   axis=-1, keepdims=True)
    ent = jnp.broadcast_to(
        jnp.sum(0.5 + HALF_LOG_2PI + params["log_std"], axis=-1, keepdims=True),
        (obs.shape[0], 1))
    return act, logp, ent


if __name__ == "__main__":
    B, OBS_DIM, ACT_DIM = 8, 32, 8

    key = jax.random.PRNGKey(0)
    k_params, k_obs, k_noise = jax.random.split(key, 3)

    params = init_params(k_params, OBS_DIM, ACT_DIM)
    obs = jax.random.normal(k_obs, (B, OBS_DIM), jnp.float32)
    noise = jax.random.normal(k_noise, (B, ACT_DIM), jnp.float32)  # eps for the sampler

    act, log_probs, entropy = ppo_policy_forward(obs, params, noise)
    jax.block_until_ready((act, log_probs, entropy))

    assert act.shape == (B, ACT_DIM)
    assert log_probs.shape == (B, 1)
    assert entropy.shape == (B, 1)

    ref_act, ref_logp, ref_ent = reference_forward(obs, params, noise)
    assert jnp.allclose(act, ref_act, atol=3e-2, rtol=3e-2), "act mismatch"
    assert jnp.allclose(log_probs, ref_logp, atol=1e-4, rtol=1e-4), "log_prob mismatch"
    assert jnp.allclose(entropy, ref_ent, atol=1e-5, rtol=1e-5), "entropy mismatch"

    # Exercise the multi-step (pipelined) grid path with a tiny block size.
    B2 = 32
    obs2 = jax.random.normal(k_obs, (B2, OBS_DIM), jnp.float32)
    noise2 = jax.random.normal(k_noise, (B2, ACT_DIM), jnp.float32)
    act2, logp2, ent2 = ppo_policy_forward(obs2, params, noise2, block_b=8)
    jax.block_until_ready((act2, logp2, ent2))
    ref_act2, ref_logp2, ref_ent2 = reference_forward(obs2, params, noise2)
    assert jnp.allclose(act2, ref_act2, atol=3e-2, rtol=3e-2), "act mismatch (tiled)"
    assert jnp.allclose(logp2, ref_logp2, atol=1e-4, rtol=1e-4), "log_prob mismatch (tiled)"
    assert jnp.allclose(ent2, ref_ent2, atol=1e-5, rtol=1e-5), "entropy mismatch (tiled)"

    print("KERNEL_OK")
</pallas_src>

<mosaic_0001>
module attributes {stable_mosaic.version = 11 : i64} {
  func.func @ppo_policy_kernel(%arg0: i32, %arg1: memref<8x32xf32, #tpu.memory_space<vmem>>, %arg2: memref<32x64xf32, #tpu.memory_space<vmem>>, %arg3: memref<1x64xf32, #tpu.memory_space<vmem>>, %arg4: memref<64x64xf32, #tpu.memory_space<vmem>>, %arg5: memref<1x64xf32, #tpu.memory_space<vmem>>, %arg6: memref<64x8xf32, #tpu.memory_space<vmem>>, %arg7: memref<1x8xf32, #tpu.memory_space<vmem>>, %arg8: memref<1x8xf32, #tpu.memory_space<vmem>>, %arg9: memref<8x8xf32, #tpu.memory_space<vmem>>, %arg10: memref<8x8xf32, #tpu.memory_space<vmem>>) attributes {dimension_semantics = [#tpu.dimension_semantics<parallel>], iteration_bounds = array<i64: 1>, scalar_prefetch = 0 : i64, scratch_operands = 0 : i64, tpu.core_type = #tpu.core_type<tc>, window_params = [{transform_indices = @transform_0, window_bounds = array<i64: 8, 32>}, {pipeline_mode = #tpu.pipeline_mode<synchronous>, transform_indices = @transform_1, window_bounds = array<i64: 32, 64>}, {pipeline_mode = #tpu.pipeline_mode<synchronous>, transform_indices = @transform_2, window_bounds = array<i64: 1, 64>}, {pipeline_mode = #tpu.pipeline_mode<synchronous>, transform_indices = @transform_3, window_bounds = array<i64: 64, 64>}, {pipeline_mode = #tpu.pipeline_mode<synchronous>, transform_indices = @transform_4, window_bounds = array<i64: 1, 64>}, {pipeline_mode = #tpu.pipeline_mode<synchronous>, transform_indices = @transform_5, window_bounds = array<i64: 64, 8>}, {pipeline_mode = #tpu.pipeline_mode<synchronous>, transform_indices = @transform_6, window_bounds = array<i64: 1, 8>}, {pipeline_mode = #tpu.pipeline_mode<synchronous>, transform_indices = @transform_7, window_bounds = array<i64: 1, 8>}, {transform_indices = @transform_8, window_bounds = array<i64: 8, 8>}, {transform_indices = @transform_9, window_bounds = array<i64: 8, 8>}]} {
    %c0 = arith.constant 0 : index
    %c0_0 = arith.constant 0 : index
    %0 = vector.load %arg1[%c0, %c0_0] : memref<8x32xf32, #tpu.memory_space<vmem>>, vector<8x32xf32>
    %1 = arith.truncf %0 : vector<8x32xf32> to vector<8x32xbf16>
    %c0_1 = arith.constant 0 : index
    %c0_2 = arith.constant 0 : index
    %2 = vector.load %arg2[%c0_1, %c0_2] : memref<32x64xf32, #tpu.memory_space<vmem>>, vector<32x64xf32>
    %3 = arith.truncf %2 : vector<32x64xf32> to vector<32x64xbf16>
    %cst = arith.constant dense<0.000000e+00> : vector<8x64xf32>
    %4 = tpu.matmul %1, %3, %cst {dimension_numbers = #tpu.dot_dimension_numbers<[1], [0], [0], [1], [0, 0, 1, 1], [], []>} : vector<8x32xbf16>, vector<32x64xbf16>, vector<8x64xf32> -> vector<8x64xf32>
    %c0_3 = arith.constant 0 : index
    %c0_4 = arith.constant 0 : index
    %5 = vector.load %arg3[%c0_3, %c0_4] : memref<1x64xf32, #tpu.memory_space<vmem>>, vector<1x64xf32>
    %6 = vector.broadcast %5 : vector<1x64xf32> to vector<8x64xf32>
    %7 = arith.addf %4, %6 : vector<8x64xf32>
    %8 = math.tanh %7 : vector<8x64xf32>
    %9 = arith.truncf %8 : vector<8x64xf32> to vector<8x64xbf16>
    %c0_5 = arith.constant 0 : index
    %c0_6 = arith.constant 0 : index
    %10 = vector.load %arg4[%c0_5, %c0_6] : memref<64x64xf32, #tpu.memory_space<vmem>>, vector<64x64xf32>
    %11 = arith.truncf %10 : vector<64x64xf32> to vector<64x64xbf16>
    %cst_7 = arith.constant dense<0.000000e+00> : vector<8x64xf32>
    %12 = tpu.matmul %9, %11, %cst_7 {dimension_numbers = #tpu.dot_dimension_numbers<[1], [0], [0], [1], [0, 0, 1, 1], [], []>} : vector<8x64xbf16>, vector<64x64xbf16>, vector<8x64xf32> -> vector<8x64xf32>
    %c0_8 = arith.constant 0 : index
    %c0_9 = arith.constant 0 : index
    %13 = vector.load %arg5[%c0_8, %c0_9] : memref<1x64xf32, #tpu.memory_space<vmem>>, vector<1x64xf32>
    %14 = vector.broadcast %13 : vector<1x64xf32> to vector<8x64xf32>
    %15 = arith.addf %12, %14 : vector<8x64xf32>
    %16 = math.tanh %15 : vector<8x64xf32>
    %17 = arith.truncf %16 : vector<8x64xf32> to vector<8x64xbf16>
    %c0_10 = arith.constant 0 : index
    %c0_11 = arith.constant 0 : index
    %18 = vector.load %arg6[%c0_10, %c0_11] : memref<64x8xf32, #tpu.memory_space<vmem>>, vector<64x8xf32>
    %19 = arith.truncf %18 : vector<64x8xf32> to vector<64x8xbf16>
    %cst_12 = arith.constant dense<0.000000e+00> : vector<8x8xf32>
    %20 = tpu.matmul %17, %19, %cst_12 {dimension_numbers = #tpu.dot_dimension_numbers<[1], [0], [0], [1], [0, 0, 1, 1], [], []>} : vector<8x64xbf16>, vector<64x8xbf16>, vector<8x8xf32> -> vector<8x8xf32>
    %c0_13 = arith.constant 0 : index
    %c0_14 = arith.constant 0 : index
    %21 = vector.load %arg7[%c0_13, %c0_14] : memref<1x8xf32, #tpu.memory_space<vmem>>, vector<1x8xf32>
    %22 = vector.broadcast %21 : vector<1x8xf32> to vector<8x8xf32>
    %23 = arith.addf %20, %22 : vector<8x8xf32>
    %c0_15 = arith.constant 0 : index
    %c0_16 = arith.constant 0 : index
    %24 = vector.load %arg8[%c0_15, %c0_16] : memref<1x8xf32, #tpu.memory_space<vmem>>, vector<1x8xf32>
    %25 = math.exp %24 : vector<1x8xf32>
    %c0_17 = arith.constant 0 : index
    %c0_18 = arith.constant 0 : index
    %26 = vector.load %arg9[%c0_17, %c0_18] : memref<8x8xf32, #tpu.memory_space<vmem>>, vector<8x8xf32>
    %27 = vector.broadcast %25 : vector<1x8xf32> to vector<8x8xf32>
    %28 = arith.mulf %27, %26 : vector<8x8xf32>
    %29 = arith.addf %23, %28 : vector<8x8xf32>
    %c0_19 = arith.constant 0 : index
    %c0_20 = arith.constant 0 : index
    %30 = vector.load %arg10[%c0_19, %c0_20] : memref<8x8xf32, #tpu.memory_space<vmem>>, vector<8x8xf32>
    tpu.vector_store %arg10[%c0_19, %c0_20], %29 {strides = array<i32>} : memref<8x8xf32, #tpu.memory_space<vmem>>, vector<8x8xf32>,
    return
  }
  func.func @transform_0(%arg0: i32) -> (i32, i32) {
    %c0_i32 = arith.constant 0 : i32
    %c0_i32_0 = arith.constant 0 : i32
    return %arg0, %c0_i32 : i32, i32
  }
  func.func @transform_1(%arg0: i32) -> (i32, i32) {
    %c0_i32 = arith.constant 0 : i32
    %c0_i32_0 = arith.constant 0 : i32
    %c0_i32_1 = arith.constant 0 : i32
    return %c0_i32, %c0_i32_0 : i32, i32
  }
  func.func @transform_2(%arg0: i32) -> (i32, i32) {
    %c0_i32 = arith.constant 0 : i32
    %c0_i32_0 = arith.constant 0 : i32
    %c0_i32_1 = arith.constant 0 : i32
    return %c0_i32, %c0_i32_0 : i32, i32
  }
  func.func @transform_3(%arg0: i32) -> (i32, i32) {
    %c0_i32 = arith.constant 0 : i32
    %c0_i32_0 = arith.constant 0 : i32
    %c0_i32_1 = arith.constant 0 : i32
    return %c0_i32, %c0_i32_0 : i32, i32
  }
  func.func @transform_4(%arg0: i32) -> (i32, i32) {
    %c0_i32 = arith.constant 0 : i32
    %c0_i32_0 = arith.constant 0 : i32
    %c0_i32_1 = arith.constant 0 : i32
    return %c0_i32, %c0_i32_0 : i32, i32
  }
  func.func @transform_5(%arg0: i32) -> (i32, i32) {
    %c0_i32 = arith.constant 0 : i32
    %c0_i32_0 = arith.constant 0 : i32
    %c0_i32_1 = arith.constant 0 : i32
    return %c0_i32, %c0_i32_0 : i32, i32
  }
  func.func @transform_6(%arg0: i32) -> (i32, i32) {
    %c0_i32 = arith.constant 0 : i32
    %c0_i32_0 = arith.constant 0 : i32
    %c0_i32_1 = arith.constant 0 : i32
    return %c0_i32, %c0_i32_0 : i32, i32
  }
  func.func @transform_7(%arg0: i32) -> (i32, i32) {
    %c0_i32 = arith.constant 0 : i32
    %c0_i32_0 = arith.constant 0 : i32
    %c0_i32_1 = arith.constant 0 : i32
    return %c0_i32, %c0_i32_0 : i32, i32
  }
  func.func @transform_8(%arg0: i32) -> (i32, i32) {
    %c0_i32 = arith.constant 0 : i32
    %c0_i32_0 = arith.constant 0 : i32
    return %arg0, %c0_i32 : i32, i32
  }
  func.func @transform_9(%arg0: i32) -> (i32, i32) {
    %c0_i32 = arith.constant 0 : i32
    %c0_i32_0 = arith.constant 0 : i32
    return %arg0, %c0_i32 : i32, i32
  }
}

</mosaic_0001>

<llo_original>
// kernel: tpu_custom_call.1
$region0: #{tpu_custom_call.1}
  #allocation0 [shape = 'u32[]', space=smem, size = 0x4, offset = 0x4, fixed_abs, tag = 'smem constant byte address 0x4 - core index']
  #allocation1 [shape = 'u32[144,128]{1,0:T(1,128)}', space=vmem, size = 0x12000, scoped, tag = 'internal scratch']
  %s0 = inlined_call_operand.vmem [shape: f32[8,32], index: 0, kind: input, shape index: {}]
  %s1 = inlined_call_operand.hbm [shape: f32[32,64], index: 1, kind: input, shape index: {}]
  %s2 = inlined_call_operand.vmem [shape: f32[1,64], index: 2, kind: input, shape index: {}]
  %s3 = inlined_call_operand.vmem [shape: f32[64,64], index: 3, kind: input, shape index: {}]
  %s4 = inlined_call_operand.vmem [shape: f32[1,64], index: 4, kind: input, shape index: {}]
  %s5 = inlined_call_operand.vmem [shape: f32[64,8], index: 5, kind: input, shape index: {}]
  %s6 = inlined_call_operand.vmem [shape: f32[1,8], index: 6, kind: input, shape index: {}]
  %s7 = inlined_call_operand.vmem [shape: f32[1,8], index: 7, kind: input, shape index: {}]
  %s8 = inlined_call_operand.vmem [shape: f32[8,8], index: 8, kind: input, shape index: {}]
  %s9 = inlined_call_operand.hbm [shape: f32[8,8], index: 9, kind: output, shape index: {}]
  %s10 = sld [smem:[#allocation0]]
  $region50: #{tpu_custom_call.1} parent=0
    _
  %s12 = ssub.s32 1, %s10
  %s13 = scalar_select 0, %s12, %s10
  $region1: #{tpu_custom_call.1} parent=0
    #allocation2 [shape = 'u8[16384]{0}', space=vmem, size = 0x4000, scoped, tag = 'input window, operand 1, single buffered']
    #allocation3 [shape = 's32[1]{0}', space=sflag, size = 0x4, scoped, tag = 'scoped memory for tpu_custom_call.1']
    #allocation4 [shape = 's32[1]{0}', space=sflag, size = 0x4, scoped, tag = 'scoped memory for tpu_custom_call.1']
    #allocation5 [shape = 'u8[4096]{0}', space=vmem, size = 0x1000, scoped, tag = 'output window, operand 0, single buffered']
    %14 = vsyncpa [#allocation3], 0
    %15 = vsyncpa [#allocation4], 0
    // Predicated region
    $region2: #{tpu_custom_call.1} parent=1 // pred_check
      _
    $region3: #{tpu_custom_call.1} parent=1 // pred_check_branch
      %17 = sbr.rel (0) target = $region5
    $region4: #{tpu_custom_call.1} parent=1 // pred_region
      _
    $region5: #{tpu_custom_call.1} parent=1 // pred_fallthru
      _
    // Predicated region
    $region6: #{tpu_custom_call.1} parent=1 // pred_check
      _
    $region7: #{tpu_custom_call.1} parent=1 // pred_check_branch
      %19 = sbr.rel (0) target = $region9
    $region8: #{tpu_custom_call.1} parent=1 // pred_region
      %s21 = ssub.s32 512, 512
      %22 = vsyncadd [#allocation3], %s21
      %s23 = sshll.u32 [#allocation2], 4
      %s24 = int_to_ptr.vmem [resolvable:$true] %s23
      %29 = dma.hbm_to_vmem [thread:$0]  %s1, 512, %s24, [#allocation3], 128, 128, 8
    $region9: #{tpu_custom_call.1} parent=1 // pred_fallthru
      _
    // Predicated region
    $region10: #{tpu_custom_call.1} parent=1 // pred_check
      _
    $region11: #{tpu_custom_call.1} parent=1 // pred_check_branch
      %31 = sbr.rel (0) target = $region13
    $region12: #{tpu_custom_call.1} parent=1 // pred_region
      _
    $region13: #{tpu_custom_call.1} parent=1 // pred_fallthru
      _
    // Predicated region
    $region14: #{tpu_custom_call.1} parent=1 // pred_check
      _
    $region15: #{tpu_custom_call.1} parent=1 // pred_check_branch
      %33 = sbr.rel (0) target = $region17
    $region16: #{tpu_custom_call.1} parent=1 // pred_region
      _
    $region17: #{tpu_custom_call.1} parent=1 // pred_fallthru
      _
    // Predicated region
    $region18: #{tpu_custom_call.1} parent=1 // pred_check
      _
    $region19: #{tpu_custom_call.1} parent=1 // pred_check_branch
      %35 = sbr.rel (0) target = $region21
    $region20: #{tpu_custom_call.1} parent=1 // pred_region
      _
    $region21: #{tpu_custom_call.1} parent=1 // pred_fallthru
      _
    // Predicated region
    $region22: #{tpu_custom_call.1} parent=1 // pred_check
      _
    $region23: #{tpu_custom_call.1} parent=1 // pred_check_branch
      %37 = sbr.rel (0) target = $region25
    $region24: #{tpu_custom_call.1} parent=1 // pred_region
      _
    $region25: #{tpu_custom_call.1} parent=1 // pred_fallthru
      _
    // Predicated region
    $region26: #{tpu_custom_call.1} parent=1 // pred_check
      _
    $region27: #{tpu_custom_call.1} parent=1 // pred_check_branch
      %39 = sbr.rel (0) target = $region29
    $region28: #{tpu_custom_call.1} parent=1 // pred_region
      _
    $region29: #{tpu_custom_call.1} parent=1 // pred_fallthru
      _
    // Predicated region
    $region30: #{tpu_custom_call.1} parent=1 // pred_check
      _
    $region31: #{tpu_custom_call.1} parent=1 // pred_check_branch
      %41 = sbr.rel (0) target = $region33
    $region32: #{tpu_custom_call.1} parent=1 // pred_region
      _
    $region33: #{tpu_custom_call.1} parent=1 // pred_fallthru
      _
    // Predicated region
    $region34: #{tpu_custom_call.1} parent=1 // pred_check
      _
    $region35: #{tpu_custom_call.1} parent=1 // pred_check_branch
      %43 = sbr.rel (0) target = $region37
    $region36: #{tpu_custom_call.1} parent=1 // pred_region
      _
    $region37: #{tpu_custom_call.1} parent=1 // pred_fallthru
      _
    // Predicated region
    $region38: #{tpu_custom_call.1} parent=1 // pred_check
      _
    $region39: #{tpu_custom_call.1} parent=1 // pred_check_branch
      %45 = sbr.rel (0) target = $region41
    $region40: #{tpu_custom_call.1} parent=1 // pred_region
      %46 = dma.done [#allocation3], 512
    $region41: #{tpu_custom_call.1} parent=1 // pred_fallthru
      _
    %v48 = vld [vmem:[%s0] sm:$0xff]
    %v49 = vpack.c.bf16 %v48, %v48
    %v50 = vld [vmem:[#allocation2] sm:$0xff]
    %v51 = vld [vmem:[#allocation2 + $0x8] sm:$0xff]
    %v52 = vld [vmem:[#allocation2 + $0x10] sm:$0xff]
    %v53 = vld [vmem:[#allocation2 + $0x18] sm:$0xff]
    %v54 = vpack.c.bf16 %v51, %v50
    %v55 = vpack.c.bf16 %v53, %v52
    %v56 = vld [vmem:[%s2] sm:$0x1]
    %v58 = vlaneseq
    %v59 = vshrl.u32 %v58, 7
    %v60 = vsub.s32 0, %v59
    %v61 = vrot.slane %v56, %v60
    %vm63 = vcmask 261120
    %v65 = vsel %vm63, %v49, 0
    %67 = vmatprep.subr.bf16.mxu0 0
    %68 = vmatpush1.bf16.msra.mxu0 %v54
    %69 = vmatprep.subr.bf16.mxu0 0
    %70 = vmatpush1.bf16.msra.mxu0 %v55
    %71 = vmatprep.subr.bf16.mxu0 0
    %72 = vmatpush1.bf16.msra.mxu0 0
    %73 = vmatprep.subr.bf16.mxu0 0
    %74 = vmatpush1.bf16.msra.mxu0 0
    %75 = vmatprep.subr.bf16.mxu0 0
    %76 = vmatpush1.bf16.msra.mxu0 0
    %77 = vmatprep.subr.bf16.mxu0 0
    %78 = vmatpush1.bf16.msra.mxu0 0
    %79 = vmatprep.subr.bf16.mxu0 0
    %80 = vmatpush1.bf16.msra.mxu0 0
    %81 = vmatprep.subr.bf16.mxu0 0
    %82 = vmatpush1.bf16.msra.mxu0 0
    %83 = vmatprep.subr.bf16.mxu0 0
    %84 = vmatpush1.bf16.msra.mxu0 0
    %85 = vmatprep.subr.bf16.mxu0 0
    %86 = vmatpush1.bf16.msra.mxu0 0
    %87 = vmatprep.subr.bf16.mxu0 0
    %88 = vmatpush1.bf16.msra.mxu0 0
    %89 = vmatprep.subr.bf16.mxu0 0
    %90 = vmatpush1.bf16.msra.mxu0 0
    %91 = vmatprep.subr.bf16.mxu0 0
    %92 = vmatpush1.bf16.msra.mxu0 0
    %93 = vmatprep.subr.bf16.mxu0 0
    %94 = vmatpush1.bf16.msra.mxu0 0
    %95 = vmatprep.subr.bf16.mxu0 0
    %96 = vmatpush1.bf16.msra.mxu0 0
    %97 = vmatprep.subr.bf16.mxu0 0
    %98 = vmatpush1.bf16.msra.mxu0 0
    %99 = vmatprep.mubr.bf16.mxu0 0
    %100 = vmatmul.mubr.bf16.gmra.mrb[0].mxu0 %v65
    %v101 = vpop.f32.mrb[0].mxu0
    %v102 = vadd.f32 %v61, %v101
    %v103 = vpop.f32.mrb[0].mxu0
    %v104 = vpop.f32.mrb[0].mxu0
    %v105 = vpop.f32.mrb[0].mxu0
    %106 = vdwg.mxu0
    %v107 = vtanh.pop %v102
    %v108 = vpack.c.bf16 %v107, %v107
    %v109 = vld [vmem:[%s3] sm:$0xff]
    %v110 = vld [vmem:[%s3 + $0x8] sm:$0xff]
    %v111 = vld [vmem:[%s3 + $0x10] sm:$0xff]
    %v112 = vld [vmem:[%s3 + $0x18] sm:$0xff]
    %v113 = vld [vmem:[%s3 + $0x20] sm:$0xff]
    %v114 = vld [vmem:[%s3 + $0x28] sm:$0xff]
    %v115 = vld [vmem:[%s3 + $0x30] sm:$0xff]
    %v116 = vld [vmem:[%s3 + $0x38] sm:$0xff]
    %v117 = vpack.c.bf16 %v110, %v109
    %v118 = vpack.c.bf16 %v112, %v111
    %v119 = vpack.c.bf16 %v114, %v113
    %v120 = vpack.c.bf16 %v116, %v115
    %v121 = vld [vmem:[%s4] sm:$0x1]
    %v123 = vlaneseq
    %v124 = vshrl.u32 %v123, 7
    %v125 = vsub.s32 0, %v124
    %v126 = vrot.slane %v121, %v125
    %vm128 = vcmask 523264
    %v130 = vsel %vm128, %v108, 0
    %132 = vmatprep.subr.bf16.mxu0 0
    %133 = vmatpush1.bf16.msra.mxu0 %v117
    %134 = vmatprep.subr.bf16.mxu0 0
    %135 = vmatpush1.bf16.msra.mxu0 %v118
    %136 = vmatprep.subr.bf16.mxu0 0
    %137 = vmatpush1.bf16.msra.mxu0 %v119
    %138 = vmatprep.subr.bf16.mxu0 0
    %139 = vmatpush1.bf16.msra.mxu0 %v120
    %140 = vmatprep.subr.bf16.mxu0 0
    %141 = vmatpush1.bf16.msra.mxu0 0
    %142 = vmatprep.subr.bf16.mxu0 0
    %143 = vmatpush1.bf16.msra.mxu0 0
    %144 = vmatprep.subr.bf16.mxu0 0
    %145 = vmatpush1.bf16.msra.mxu0 0
    %146 = vmatprep.subr.bf16.mxu0 0
    %147 = vmatpush1.bf16.msra.mxu0 0
    %148 = vmatprep.subr.bf16.mxu0 0
    %149 = vmatpush1.bf16.msra.mxu0 0
    %150 = vmatprep.subr.bf16.mxu0 0
    %151 = vmatpush1.bf16.msra.mxu0 0
    %152 = vmatprep.subr.bf16.mxu0 0
    %153 = vmatpush1.bf16.msra.mxu0 0
    %154 = vmatprep.subr.bf16.mxu0 0
    %155 = vmatpush1.bf16.msra.mxu0 0
    %156 = vmatprep.subr.bf16.mxu0 0
    %157 = vmatpush1.bf16.msra.mxu0 0
    %158 = vmatprep.subr.bf16.mxu0 0
    %159 = vmatpush1.bf16.msra.mxu0 0
    %160 = vmatprep.subr.bf16.mxu0 0
    %161 = vmatpush1.bf16.msra.mxu0 0
    %162 = vmatprep.subr.bf16.mxu0 0
    %163 = vmatpush1.bf16.msra.mxu0 0
    %164 = vmatprep.mubr.bf16.mxu0 0
    %165 = vmatmul.mubr.bf16.gmra.mrb[0].mxu0 %v130
    %v166 = vpop.f32.mrb[0].mxu0
    %v167 = vadd.f32 %v126, %v166
    %v168 = vpop.f32.mrb[0].mxu0
    %v169 = vpop.f32.mrb[0].mxu0
    %v170 = vpop.f32.mrb[0].mxu0
    %171 = vdwg.mxu0
    %v172 = vtanh.pop %v167
    %v173 = vpack.c.bf16 %v172, %v172
    %v174 = vld [vmem:[%s5] sm:$0xff]
    %v175 = vld [vmem:[%s5 + $0x8] sm:$0xff]
    %v176 = vld [vmem:[%s5 + $0x10] sm:$0xff]
    %v177 = vld [vmem:[%s5 + $0x18] sm:$0xff]
    %v178 = vld [vmem:[%s5 + $0x20] sm:$0xff]
    %v179 = vld [vmem:[%s5 + $0x28] sm:$0xff]
    %v180 = vld [vmem:[%s5 + $0x30] sm:$0xff]
    %v181 = vld [vmem:[%s5 + $0x38] sm:$0xff]
    %v182 = vpack.c.bf16 %v175, %v174
    %v183 = vpack.c.bf16 %v177, %v176
    %v184 = vpack.c.bf16 %v179, %v178
    %v185 = vpack.c.bf16 %v181, %v180
    %v186 = vld [vmem:[%s6] sm:$0x1]
    %v188 = vlaneseq
    %v189 = vshrl.u32 %v188, 7
    %v190 = vsub.s32 0, %v189
    %v191 = vrot.slane %v186, %v190
    %v194 = vsel %vm128, %v173, 0
    %196 = vmatprep.subr.bf16.mxu0 0
    %197 = vmatpush1.bf16.msra.mxu0 %v182
    %198 = vmatprep.subr.bf16.mxu0 0
    %199 = vmatpush1.bf16.msra.mxu0 %v183
    %200 = vmatprep.subr.bf16.mxu0 0
    %201 = vmatpush1.bf16.msra.mxu0 %v184
    %202 = vmatprep.subr.bf16.mxu0 0
    %203 = vmatpush1.bf16.msra.mxu0 %v185
    %204 = vmatprep.subr.bf16.mxu0 0
    %205 = vmatpush1.bf16.msra.mxu0 0
    %206 = vmatprep.subr.bf16.mxu0 0
    %207 = vmatpush1.bf16.msra.mxu0 0
    %208 = vmatprep.subr.bf16.mxu0 0
    %209 = vmatpush1.bf16.msra.mxu0 0
    %210 = vmatprep.subr.bf16.mxu0 0
    %211 = vmatpush1.bf16.msra.mxu0 0
    %212 = vmatprep.subr.bf16.mxu0 0
    %213 = vmatpush1.bf16.msra.mxu0 0
    %214 = vmatprep.subr.bf16.mxu0 0
    %215 = vmatpush1.bf16.msra.mxu0 0
    %216 = vmatprep.subr.bf16.mxu0 0
    %217 = vmatpush1.bf16.msra.mxu0 0
    %218 = vmatprep.subr.bf16.mxu0 0
    %219 = vmatpush1.bf16.msra.mxu0 0
    %220 = vmatprep.subr.bf16.mxu0 0
    %221 = vmatpush1.bf16.msra.mxu0 0
    %222 = vmatprep.subr.bf16.mxu0 0
    %223 = vmatpush1.bf16.msra.mxu0 0
    %224 = vmatprep.subr.bf16.mxu0 0
    %225 = vmatpush1.bf16.msra.mxu0 0
    %226 = vmatprep.subr.bf16.mxu0 0
    %227 = vmatpush1.bf16.msra.mxu0 0
    %228 = vmatprep.mubr.bf16.mxu0 0
    %229 = vmatmul.mubr.bf16.gmra.mrb[0].mxu0 %v194
    %v230 = vpop.f32.mrb[0].mxu0
    %v231 = vadd.f32 %v191, %v230
    %v232 = vpop.f32.mrb[0].mxu0
    %v233 = vpop.f32.mrb[0].mxu0
    %v234 = vpop.f32.mrb[0].mxu0
    %235 = vdwg.mxu0
    %v236 = vld [vmem:[%s7] sm:$0x1]
    %v237 = vmul.f32 %v236, 1.442695
    %v238 = vpow.pop %v237
    %v239 = vld [vmem:[%s8] sm:$0xff]
    %v241 = vlaneseq
    %v242 = vshrl.u32 %v241, 7
    %v243 = vsub.s32 0, %v242
    %v244 = vrot.slane %v238, %v243
    %v246 = vmul.f32 %v244, %v239
    %v247 = vadd.f32 %v231, %v246
    %vm248 = vcmask 64512
    %249 = vst.msk [vmem:[#allocation5] sm:$0xff] %vm248, %v247
    // Predicated region
    $region42: #{tpu_custom_call.1} parent=1 // pred_check
      _
    $region43: #{tpu_custom_call.1} parent=1 // pred_check_branch
      %251 = sbr.rel (0) target = $region45
    $region44: #{tpu_custom_call.1} parent=1 // pred_region
      %s253 = ssub.s32 128, 128
      %254 = vsyncadd [#allocation4], %s253
      %s256 = sshll.u32 [#allocation5], 4
      %s257 = int_to_ptr.vmem [resolvable:$true] %s256
      %259 = dma.vmem_to_hbm [thread:$0]  %s257, 128, %s9, [#allocation4]
    $region45: #{tpu_custom_call.1} parent=1 // pred_fallthru
      _
    // Predicated region
    $region46: #{tpu_custom_call.1} parent=1 // pred_check
      _
    $region47: #{tpu_custom_call.1} parent=1 // pred_check_branch
      %261 = sbr.rel (0) target = $region49
    $region48: #{tpu_custom_call.1} parent=1 // pred_region
      %262 = dma.done [#allocation4], 128
    $region49: #{tpu_custom_call.1} parent=1 // pred_fallthru
      _
    %263 = vsyncpa [#allocation3], 1
    %264 = vsyncpa [#allocation4], 1

</llo_original>
